<compile_context>
chip_gen: v6e
topology: v6e:2x2x1
jax: 0.10.0
libtpu: 0.0.40
codegen_flags: <defaults>
</compile_context>

<pallas_src>
import functools

import jax
import jax.numpy as jnp
from jax.experimental import pallas as pl
from jax.experimental.pallas import tpu as pltpu


_LOGITS_TILE_BYTES = 2 * 1024 * 1024   # budget per pipeline buffer for the logits block
_VMEM_LIMIT_BYTES = 32 * 1024 * 1024   # explicit scoped-VMEM limit (safe on v5e/v6e/v7x)


def _round_up(x, m):
    return ((x + m - 1) // m) * m


def _choose_tile_n(n, c):
    """Rows per tile: biggest tile inside the VMEM budget, (8,128)-friendly."""
    max_rows = max(8, _LOGITS_TILE_BYTES // (c * 4))
    if n <= max_rows:
        # Single tile: only needs sublane (8) alignment; block == full array.
        return _round_up(n, 8)
    # Multi-tile: TILE_N must be a multiple of 128 so the lane-dense
    # (1, TILE_N) output block satisfies the last-dim constraint.
    tile = max(128, (max_rows // 128) * 128)
    return min(tile, 1024)


def _int_pow(x, n):
    """x**n for non-negative integer n via unrolled multiplies (VPU only)."""
    if n == 0:
        return jnp.ones_like(x)
    acc = None
    base = x
    while n:
        if n & 1:
            acc = base if acc is None else acc * base
        n >>= 1
        if n:
            base = base * base
    return acc


def _focal_tile(x, t, alpha_row, *, gamma):
    """Per-sample focal loss for one tile. x: (T,C) f32, t: (T,1) i32 -> (T,1)."""
    tn, c = x.shape
    # Numerically stable log-sum-exp (the heavy, lane-dense part of the kernel).
    m = jnp.max(x, axis=-1, keepdims=True)                        # (T,1)
    lse = jnp.log(jnp.sum(jnp.exp(x - m), axis=-1, keepdims=True)) + m
    cls = jax.lax.broadcasted_iota(jnp.int32, (tn, c), 1)         # (T,C)
    onehot = (cls == t).astype(jnp.float32)                       # (T,C)
    logit_t = jnp.sum(x * onehot, axis=-1, keepdims=True)         # (T,1)
    ce = jnp.maximum(lse - logit_t, 0.0)                          # clamp >= 0
    pt = jnp.exp(-ce)                                             # <= 1
    q = 1.0 - pt                                                  # >= 0
    g = float(gamma)
    if g.is_integer() and 0.0 <= g <= 64.0:
        w = _int_pow(q, int(g))                                   # VPU multiplies
    else:
        w = jnp.power(jnp.maximum(q, 0.0), g)                     # EUP fallback
    focal = w * ce                                                # (T,1)
    if alpha_row is not None:
        # alpha[targets] via one-hot contraction (no gather needed).
        alpha_t = jnp.sum(onehot * alpha_row, axis=-1, keepdims=True)
        focal = alpha_t * focal
    return focal


def _maybe_mask(focal, *, tile_n, n_valid, mask_rows):
    if not mask_rows:
        return focal
    row = pl.program_id(0) * tile_n + jax.lax.broadcasted_iota(
        jnp.int32, (tile_n, 1), 0
    )
    return jnp.where(row < n_valid, focal, 0.0)


def _focal_kernel_noalpha(x_ref, t_ref, o_ref, *, gamma, tile_n, n_valid, mask_rows):
    x = x_ref[...].astype(jnp.float32)
    t = t_ref[...].astype(jnp.int32)
    focal = _focal_tile(x, t, None, gamma=gamma)
    focal = _maybe_mask(focal, tile_n=tile_n, n_valid=n_valid, mask_rows=mask_rows)
    o_ref[...] = jnp.transpose(focal, (1, 0))        # lane-dense (1, TILE_N) store


def _focal_kernel_alpha(x_ref, t_ref, a_ref, o_ref, *, gamma, tile_n, n_valid,
                        mask_rows):
    x = x_ref[...].astype(jnp.float32)
    t = t_ref[...].astype(jnp.int32)
    alpha_row = a_ref[...].astype(jnp.float32)        # (1, C)
    focal = _focal_tile(x, t, alpha_row, gamma=gamma)
    focal = _maybe_mask(focal, tile_n=tile_n, n_valid=n_valid, mask_rows=mask_rows)
    o_ref[...] = jnp.transpose(focal, (1, 0))


def focal_loss(inputs, targets, alpha=None, gamma=2, reduction="mean", tile_n=None):
    """Pallas implementation of FocalLoss.forward.

    inputs:  (N, C) float logits
    targets: (N,)   int class indices
    alpha:   optional (C,) per-class weights
    """
    n, c = inputs.shape
    if tile_n is None:
        tile_n = _choose_tile_n(n, c)
    else:
        tile_n = int(tile_n)
        if tile_n % 8 != 0:
            raise ValueError("tile_n must be a multiple of 8")
        if pl.cdiv(n, tile_n) > 1 and tile_n % 128 != 0:
            raise ValueError("multi-tile tile_n must be a multiple of 128")

    n_pad = _round_up(n, tile_n)
    num_tiles = n_pad // tile_n
    mask_rows = n_pad != n

    t2 = targets.astype(jnp.int32).reshape(n, 1)
    x = inputs
    if mask_rows:
        x = jnp.pad(x, ((0, n_pad - n), (0, 0)))
        t2 = jnp.pad(t2, ((0, n_pad - n), (0, 0)))

    in_specs = [
        pl.BlockSpec((tile_n, c), lambda i: (i, 0)),   # logits tile
        pl.BlockSpec((tile_n, 1), lambda i: (i, 0)),   # targets tile
    ]
    args = [x, t2]

    common = dict(gamma=float(gamma), tile_n=tile_n, n_valid=n, mask_rows=mask_rows)
    if alpha is None:
        kernel = functools.partial(_focal_kernel_noalpha, **common)
    else:
        kernel = functools.partial(_focal_kernel_alpha, **common)
        in_specs.append(pl.BlockSpec((1, c), lambda i: (0, 0)))    # resident alpha row
        args.append(jnp.asarray(alpha, jnp.float32).reshape(1, c))

    out = pl.pallas_call(
        kernel,
        out_shape=jax.ShapeDtypeStruct((1, n_pad), jnp.float32),
        grid=(num_tiles,),
        in_specs=in_specs,
        out_specs=pl.BlockSpec((1, tile_n), lambda i: (0, i)),     # lane-dense row
        compiler_params=pltpu.CompilerParams(
            dimension_semantics=("parallel",),       # independent tiles -> megacore
            vmem_limit_bytes=_VMEM_LIMIT_BYTES,
        ),
    )(*args)

    row = out[0]                      # (n_pad,), padded entries are exactly 0
    if reduction == "mean":
        return jnp.sum(row) / jnp.float32(n)
    if reduction == "sum":
        return jnp.sum(row)
    return row[:n]


def _focal_loss_ref(inputs, targets, alpha=None, gamma=2, reduction="mean"):
    """Pure-JAX reference mirroring torch.nn.functional semantics."""
    logp = jax.nn.log_softmax(inputs.astype(jnp.float32), axis=-1)
    ce = -jnp.take_along_axis(logp, targets[:, None].astype(jnp.int32), axis=-1)[:, 0]
    pt = jnp.exp(-ce)
    focal = (1.0 - pt) ** gamma * ce
    if alpha is not None:
        focal = jnp.asarray(alpha, jnp.float32)[targets] * focal
    if reduction == "mean":
        return jnp.mean(focal)
    if reduction == "sum":
        return jnp.sum(focal)
    return focal


if __name__ == "__main__":
    key = jax.random.PRNGKey(0)
    k1, k2, k3, k4 = jax.random.split(key, 4)

    # Small default-config case: batch=8 samples, 32 classes, gamma=2, mean.
    N, C = 8, 32
    logits = jax.random.normal(k1, (N, C), dtype=jnp.float32)
    targets = jax.random.randint(k2, (N,), 0, C, dtype=jnp.int32)

    loss = focal_loss(logits, targets, alpha=None, gamma=2, reduction="mean")
    loss = jax.block_until_ready(loss)
    ref = _focal_loss_ref(logits, targets, alpha=None, gamma=2, reduction="mean")
    assert jnp.allclose(loss, ref, atol=1e-5, rtol=1e-5), (loss, ref)

    # Alpha-weighted path, all reductions.
    alpha_vec = jnp.linspace(0.5, 1.5, C, dtype=jnp.float32)
    for red in ("mean", "sum", "none"):
        got = focal_loss(logits, targets, alpha=alpha_vec, gamma=2, reduction=red)
        got = jax.block_until_ready(got)
        ref_r = _focal_loss_ref(logits, targets, alpha=alpha_vec, gamma=2,
                                reduction=red)
        assert jnp.allclose(got, ref_r, atol=1e-5, rtol=1e-5), (red, got, ref_r)

    # Multi-tile + ragged-batch path (N not a multiple of the tile): exercises
    # the parallel grid, lane-dense per-tile stores and row masking.
    N2, C2 = 300, 40
    logits2 = jax.random.normal(k3, (N2, C2), dtype=jnp.float32)
    targets2 = jax.random.randint(k4, (N2,), 0, C2, dtype=jnp.int32)
    for red in ("mean", "sum", "none"):
        got = focal_loss(logits2, targets2, gamma=2, reduction=red, tile_n=128)
        got = jax.block_until_ready(got)
        ref_r = _focal_loss_ref(logits2, targets2, gamma=2, reduction=red)
        assert jnp.allclose(got, ref_r, atol=1e-4, rtol=1e-4), (red,)

    print("KERNEL_OK")
</pallas_src>

<mosaic_0001>
module attributes {stable_mosaic.version = 11 : i64} {
  func.func @_focal_kernel_noalpha(%arg0: i32, %arg1: memref<8x32xf32, #tpu.memory_space<vmem>>, %arg2: memref<8x1xi32, #tpu.memory_space<vmem>>, %arg3: memref<1x8xf32, #tpu.memory_space<vmem>>) attributes {dimension_semantics = [#tpu.dimension_semantics<parallel>], iteration_bounds = array<i64: 1>, scalar_prefetch = 0 : i64, scratch_operands = 0 : i64, tpu.core_type = #tpu.core_type<tc>, window_params = [{transform_indices = @transform_0, window_bounds = array<i64: 8, 32>}, {transform_indices = @transform_1, window_bounds = array<i64: 8, 1>}, {transform_indices = @transform_2, window_bounds = array<i64: 1, 8>}]} {
    %c0 = arith.constant 0 : index
    %c0_0 = arith.constant 0 : index
    %0 = vector.load %arg1[%c0, %c0_0] : memref<8x32xf32, #tpu.memory_space<vmem>>, vector<8x32xf32>
    %c0_1 = arith.constant 0 : index
    %c0_2 = arith.constant 0 : index
    %1 = vector.load %arg2[%c0_1, %c0_2] : memref<8x1xi32, #tpu.memory_space<vmem>>, vector<8x1xi32>
    %cst = arith.constant dense<0xFF800000> : vector<8xf32>
    %2 = vector.multi_reduction <maximumf>, %0, %cst [1] : vector<8x32xf32> to vector<8xf32>
    %3 = vector.shape_cast %2 : vector<8xf32> to vector<8x1xf32>
    %4 = vector.broadcast %3 : vector<8x1xf32> to vector<8x32xf32>
    %5 = arith.subf %0, %4 : vector<8x32xf32>
    %6 = math.exp %5 : vector<8x32xf32>
    %cst_3 = arith.constant dense<0.000000e+00> : vector<8xf32>
    %7 = vector.multi_reduction <add>, %6, %cst_3 [1] : vector<8x32xf32> to vector<8xf32>
    %8 = vector.shape_cast %7 : vector<8xf32> to vector<8x1xf32>
    %9 = math.log %8 : vector<8x1xf32>
    %10 = arith.addf %9, %3 : vector<8x1xf32>
    %11 = tpu.iota {dimensions = array<i32: 1>} : vector<8x32xi32>
    %12 = vector.broadcast %1 : vector<8x1xi32> to vector<8x32xi32>
    %13 = arith.cmpi eq, %11, %12 : vector<8x32xi32>
    %14 = arith.extui %13 : vector<8x32xi1> to vector<8x32xi32>
    %15 = arith.sitofp %14 : vector<8x32xi32> to vector<8x32xf32>
    %16 = arith.mulf %0, %15 : vector<8x32xf32>
    %cst_4 = arith.constant dense<0.000000e+00> : vector<8xf32>
    %17 = vector.multi_reduction <add>, %16, %cst_4 [1] : vector<8x32xf32> to vector<8xf32>
    %18 = vector.shape_cast %17 : vector<8xf32> to vector<8x1xf32>
    %19 = arith.subf %10, %18 : vector<8x1xf32>
    %cst_5 = arith.constant 0.000000e+00 : f32
    %20 = vector.broadcast %cst_5 : f32 to vector<8x1xf32>
    %21 = arith.maximumf %19, %20 : vector<8x1xf32>
    %cst_6 = arith.constant 0.000000e+00 : f32
    %22 = vector.broadcast %cst_6 : f32 to vector<8x1xf32>
    %23 = arith.subf %22, %21 : vector<8x1xf32>
    %24 = math.exp %23 : vector<8x1xf32>
    %cst_7 = arith.constant 1.000000e+00 : f32
    %25 = vector.broadcast %cst_7 : f32 to vector<8x1xf32>
    %26 = arith.subf %25, %24 : vector<8x1xf32>
    %27 = arith.mulf %26, %26 : vector<8x1xf32>
    %28 = arith.mulf %27, %21 : vector<8x1xf32>
    %29 = tpu.transpose %28, [1, 0] : vector<8x1xf32> -> vector<1x8xf32>
    %c0_8 = arith.constant 0 : index
    %c0_9 = arith.constant 0 : index
    %30 = vector.load %arg3[%c0_8, %c0_9] : memref<1x8xf32, #tpu.memory_space<vmem>>, vector<1x8xf32>
    tpu.vector_store %arg3[%c0_8, %c0_9], %29 {strides = array<i32>} : memref<1x8xf32, #tpu.memory_space<vmem>>, vector<1x8xf32>,
    return
  }
  func.func @transform_0(%arg0: i32) -> (i32, i32) {
    %c0_i32 = arith.constant 0 : i32
    %c0_i32_0 = arith.constant 0 : i32
    return %arg0, %c0_i32 : i32, i32
  }
  func.func @transform_1(%arg0: i32) -> (i32, i32) {
    %c0_i32 = arith.constant 0 : i32
    %c0_i32_0 = arith.constant 0 : i32
    return %arg0, %c0_i32 : i32, i32
  }
  func.func @transform_2(%arg0: i32) -> (i32, i32) {
    %c0_i32 = arith.constant 0 : i32
    %c0_i32_0 = arith.constant 0 : i32
    return %c0_i32, %arg0 : i32, i32
  }
}

</mosaic_0001>

<llo_original>
// kernel: tpu_custom_call.1
$region0: #{tpu_custom_call.1}
  #allocation0 [shape = 'u32[]', space=smem, size = 0x4, offset = 0x4, fixed_abs, tag = 'smem constant byte address 0x4 - core index']
  #allocation1 [shape = 'u32[144,128]{1,0:T(1,128)}', space=vmem, size = 0x12000, scoped, tag = 'internal scratch']
  %s0 = inlined_call_operand.vmem [shape: f32[8,32], index: 0, kind: input, shape index: {}]
  %s1 = inlined_call_operand.vmem [shape: s32[8,1], index: 1, kind: input, shape index: {}]
  %s2 = inlined_call_operand.hbm [shape: f32[1,8], index: 2, kind: output, shape index: {}]
  %s3 = sld [smem:[#allocation0]]
  $region18: #{tpu_custom_call.1} parent=0
    _
  %s5 = ssub.s32 1, %s3
  %s6 = scalar_select 0, %s5, %s3
  $region1: #{tpu_custom_call.1} parent=0
    #allocation2 [shape = 'u8[512]{0}', space=vmem, size = 0x400, scoped, tag = 'output window, operand 0, single buffered']
    #allocation3 [shape = 's32[1]{0}', space=sflag, size = 0x4, scoped, tag = 'scoped memory for tpu_custom_call.1']
    %7 = vsyncpa [#allocation3], 0
    // Predicated region
    $region2: #{tpu_custom_call.1} parent=1 // pred_check
      _
    $region3: #{tpu_custom_call.1} parent=1 // pred_check_branch
      %9 = sbr.rel (0) target = $region5
    $region4: #{tpu_custom_call.1} parent=1 // pred_region
      _
    $region5: #{tpu_custom_call.1} parent=1 // pred_fallthru
      _
    // Predicated region
    $region6: #{tpu_custom_call.1} parent=1 // pred_check
      _
    $region7: #{tpu_custom_call.1} parent=1 // pred_check_branch
      %11 = sbr.rel (0) target = $region9
    $region8: #{tpu_custom_call.1} parent=1 // pred_region
      _
    $region9: #{tpu_custom_call.1} parent=1 // pred_fallthru
      _
    %v12 = vld [vmem:[%s0] sm:$0xff]
    %v13 = vld [vmem:[%s1] sm:$0xff]
    %vm14 = vcmask 261120
    %v15 = vsel %vm14, %v12, -inf
    %16 = vmax.xlane.f32.xlu0 %v15
    %v17 = vpop.xlane.xlu0 %16
    %v18 = vsub.f32 %v12, %v17
    %v19 = vmul.f32 %v18, 1.442695
    %v20 = vpow.pop %v19
    %v21 = vsel %vm14, %v20, 0.0
    %22 = vadd.xlane.f32.xlu0 %v21
    %v23 = vpop.xlane.xlu0 %22
    %v24 = vlog2.pop %v23
    %v25 = vmul.f32 %v24, 0.6931472
    %v26 = vadd.f32 %v25, %v17
    %v27 = vlaneseq
    %v28 = vand.u32 %v27, 127
    %29 = vset.pattern.permute.xlu0 0
    %30 = vperm.xlu0 %29, %v13
    %v31 = vpop.permute.xlu0 %30
    %vm32 = vcmp.eq.s32.totalorder %v28, %v31
    %v33 = vsel %vm32, 1, 0
    %v34 = vcvt.s32.f32 %v33
    %v35 = vmul.f32 %v12, %v34
    %v36 = vsel %vm14, %v35, 0.0
    %37 = vadd.xlane.f32.xlu0 %v36
    %v38 = vpop.xlane.xlu0 %37
    %v39 = vsub.f32 %v26, %v38
    %v40 = vmax.f32 %v39, 0.0
    %v41 = vsub.f32 0.0, %v40
    %v42 = vmul.f32 %v41, 1.442695
    %v43 = vpow.pop %v42
    %v44 = vsub.f32 1.0, %v43
    %v45 = vmul.f32 %v44, %v44
    %v46 = vmul.f32 %v45, %v40
    %47 = vxpose.xlu0.b32.start [1/16] %v46, 128
    %48 = vxpose.xlu0.b32.cont [2/16] 0.0, 128
    %49 = vxpose.xlu0.b32.cont [3/16] 0.0, 128
    %50 = vxpose.xlu0.b32.cont [4/16] 0.0, 128
    %51 = vxpose.xlu0.b32.cont [5/16] 0.0, 128
    %52 = vxpose.xlu0.b32.cont [6/16] 0.0, 128
    %53 = vxpose.xlu0.b32.cont [7/16] 0.0, 128
    %54 = vxpose.xlu0.b32.cont [8/16] 0.0, 128
    %55 = vxpose.xlu0.b32.cont [9/16] 0.0, 128
    %56 = vxpose.xlu0.b32.cont [10/16] 0.0, 128
    %57 = vxpose.xlu0.b32.cont [11/16] 0.0, 128
    %58 = vxpose.xlu0.b32.cont [12/16] 0.0, 128
    %59 = vxpose.xlu0.b32.cont [13/16] 0.0, 128
    %60 = vxpose.xlu0.b32.cont [14/16] 0.0, 128
    %61 = vxpose.xlu0.b32.cont [15/16] 0.0, 128
    %62 = vxpose.xlu0.b32.end [16/16] 0.0, 128
    %v63 = vpop.trf.xlu0
    %v64 = vpop.trf.xlu0
    %v65 = vpop.trf.xlu0
    %v66 = vpop.trf.xlu0
    %v67 = vpop.trf.xlu0
    %v68 = vpop.trf.xlu0
    %v69 = vpop.trf.xlu0
    %v70 = vpop.trf.xlu0
    %v71 = vpop.trf.xlu0
    %v72 = vpop.trf.xlu0
    %v73 = vpop.trf.xlu0
    %v74 = vpop.trf.xlu0
    %v75 = vpop.trf.xlu0
    %v76 = vpop.trf.xlu0
    %v77 = vpop.trf.xlu0
    %v78 = vpop.trf.xlu0
    %vm79 = vcmask 57344
    %80 = vst.msk [vmem:[#allocation2] sm:$0x1] %vm79, %v63
    // Predicated region
    $region10: #{tpu_custom_call.1} parent=1 // pred_check
      _
    $region11: #{tpu_custom_call.1} parent=1 // pred_check_branch
      %82 = sbr.rel (0) target = $region13
    $region12: #{tpu_custom_call.1} parent=1 // pred_region
      %s84 = ssub.s32 16, 16
      %85 = vsyncadd [#allocation3], %s84
      %s87 = sshll.u32 [#allocation2], 4
      %s88 = int_to_ptr.vmem [resolvable:$true] %s87
      %90 = dma.vmem_to_hbm [thread:$0]  %s88, 16, %s2, [#allocation3]
    $region13: #{tpu_custom_call.1} parent=1 // pred_fallthru
      _
    // Predicated region
    $region14: #{tpu_custom_call.1} parent=1 // pred_check
      _
    $region15: #{tpu_custom_call.1} parent=1 // pred_check_branch
      %92 = sbr.rel (0) target = $region17
    $region16: #{tpu_custom_call.1} parent=1 // pred_region
      %93 = dma.done [#allocation3], 16
    $region17: #{tpu_custom_call.1} parent=1 // pred_fallthru
      _
    %94 = vsyncpa [#allocation3], 1

</llo_original>
